<compile_context>
chip_gen: v6e
topology: v6e:2x2x1
jax: 0.10.0
libtpu: 0.0.40
codegen_flags: <defaults>
</compile_context>

<pallas_src>
from functools import partial

import jax
import jax.numpy as jnp
from jax import lax
from jax.experimental import pallas as pl
from jax.experimental.pallas import tpu as pltpu

LANES = 128          # lane width of a vreg; we pad Dh=50 and Dout=3 up to this
DIN = 3              # nn.Linear(3, 50) input features (unroll count below)


def _round_up(x, m):
    return ((x + m - 1) // m) * m


def _rhs(y, w1_rows, b1, w2, b2):
    """One RHS eval on lane-padded tiles.

    y        : (Bt, >=3) f32  (only lanes 0..2 are read)
    w1_rows  : 3 tuples of (1, LANES) f32 (rows of padded W1)
    b1, b2   : (1, LANES) f32
    w2       : (LANES, LANES) f32 (zero-padded)
    returns  : (Bt, LANES) f32
    """
    # K=3 contraction as unrolled VPU FMAs (no MXU round trip for layer 1).
    h = (y[:, 0:1] * w1_rows[0]
         + y[:, 1:2] * w1_rows[1]
         + y[:, 2:3] * w1_rows[2]
         + b1)
    h = jnp.maximum(h, 0.0)                                  # ReLU
    # Layer 2: 50(->128)-deep contraction belongs on the MXU.
    return jnp.dot(h, w2, preferred_element_type=jnp.float32) + b2


# ---------------------------------------------------------------------------
# Single RHS evaluation (== ODEFunc.forward)
# ---------------------------------------------------------------------------
def odefunc_kernel(y_ref, w1_ref, b1_ref, w2_ref, b2_ref, o_ref):
    w1 = w1_ref[...]                                          # (3, LANES)
    out = _rhs(
        y_ref[...],
        (w1[0:1, :], w1[1:2, :], w1[2:3, :]),
        b1_ref[...], w2_ref[...], b2_ref[...],
    )
    o_ref[...] = out.astype(o_ref.dtype)                      # lane-dense store


def _pad_params(w1, b1, w2, b2):
    """Zero-pad weights/biases to lane-dense shapes (done once, outside kernel)."""
    din, dh = w1.shape
    dout = w2.shape[1]
    w1p = jnp.zeros((din, LANES), w1.dtype).at[:, :dh].set(w1)
    b1p = jnp.zeros((1, LANES), b1.dtype).at[:, :dh].set(b1.reshape(1, dh))
    w2p = jnp.zeros((LANES, LANES), w2.dtype).at[:dh, :dout].set(w2)
    b2p = jnp.zeros((1, LANES), b2.dtype).at[:, :dout].set(b2.reshape(1, dout))
    return w1p, b1p, w2p, b2p


def odefunc_forward(t, y, w1, b1, w2, b2, *, batch_tile=256):
    """Pallas forward pass. `t` is ignored (matches PyTorch ODEFunc.forward)."""
    del t
    B, din = y.shape
    assert din == DIN, "kernel unrolls the K=3 contraction"
    dout = w2.shape[1]

    w1p, b1p, w2p, b2p = _pad_params(w1, b1, w2, b2)

    # Batch tiling: tile is a multiple of 8 sublanes; grid axis is "parallel"
    # so it shards across TensorCores (v7x megacore) once B is large.
    bt = min(batch_tile, _round_up(B, 8))
    Bp = _round_up(B, bt)
    yp = y if Bp == B else jnp.zeros((Bp, din), y.dtype).at[:B].set(y)

    out = pl.pallas_call(
        odefunc_kernel,
        out_shape=jax.ShapeDtypeStruct((Bp, LANES), y.dtype),
        grid=(Bp // bt,),
        in_specs=[
            pl.BlockSpec((bt, din), lambda i: (i, 0)),        # y tile
            pl.BlockSpec((din, LANES), lambda i: (0, 0)),     # W1 (resident)
            pl.BlockSpec((1, LANES), lambda i: (0, 0)),       # b1
            pl.BlockSpec((LANES, LANES), lambda i: (0, 0)),   # W2
            pl.BlockSpec((1, LANES), lambda i: (0, 0)),       # b2
        ],
        out_specs=pl.BlockSpec((bt, LANES), lambda i: (i, 0)),
        compiler_params=pltpu.CompilerParams(
            dimension_semantics=("parallel",)),
    )(yp, w1p, b1p, w2p, b2p)

    return out[:B, :dout]


# ---------------------------------------------------------------------------
# Fused explicit-Euler rollout: many RHS evals inside ONE pallas_call.
# (Demonstrates the "fuse the time loop" feedback; the single-RHS forward above
#  keeps the original module semantics.)
# ---------------------------------------------------------------------------
def odefunc_rollout_kernel(y0_ref, w1_ref, b1_ref, w2_ref, b2_ref, o_ref, *,
                           num_steps, dt):
    # Weights loaded and broadcasts/row-slices hoisted ONCE, outside the loop.
    w1 = w1_ref[...]
    w1_rows = (w1[0:1, :], w1[1:2, :], w1[2:3, :])
    b1 = b1_ref[...]
    w2 = w2_ref[...]
    b2 = b2_ref[...]

    def body(_, y):
        return y + dt * _rhs(y, w1_rows, b1, w2, b2)

    y = lax.fori_loop(0, num_steps, body, y0_ref[...])
    o_ref[...] = y.astype(o_ref.dtype)


def odefunc_euler_rollout(y0, w1, b1, w2, b2, *, num_steps, dt):
    """y_{k+1} = y_k + dt * net(y_k), fused into a single kernel launch."""
    B, din = y0.shape
    assert din == DIN
    dout = w2.shape[1]

    w1p, b1p, w2p, b2p = _pad_params(w1, b1, w2, b2)
    Bp = _round_up(B, 8)
    # Lane-padded state: real state lives in lanes 0..2, padded lanes stay 0.
    y0p = jnp.zeros((Bp, LANES), y0.dtype).at[:B, :din].set(y0)

    vmem = pl.BlockSpec(memory_space=pltpu.MemorySpace.VMEM)
    out = pl.pallas_call(
        partial(odefunc_rollout_kernel, num_steps=num_steps, dt=dt),
        out_shape=jax.ShapeDtypeStruct((Bp, LANES), y0.dtype),
        in_specs=[vmem, vmem, vmem, vmem, vmem],
        out_specs=vmem,
    )(y0p, w1p, b1p, w2p, b2p)
    return out[:B, :dout]


# ---------------------------------------------------------------------------
# Params / reference / demo
# ---------------------------------------------------------------------------
def init_params(key, din=3, dh=50, dout=3, dtype=jnp.float32):
    # Deterministic init mimicking nn.Linear defaults: U(-1/sqrt(fan_in), +).
    k1, k2, k3, k4 = jax.random.split(key, 4)
    s1 = 1.0 / jnp.sqrt(jnp.asarray(din, dtype))
    s2 = 1.0 / jnp.sqrt(jnp.asarray(dh, dtype))
    w1 = jax.random.uniform(k1, (din, dh), dtype, -s1, s1)    # stored (in, out)
    b1 = jax.random.uniform(k2, (1, dh), dtype, -s1, s1)
    w2 = jax.random.uniform(k3, (dh, dout), dtype, -s2, s2)
    b2 = jax.random.uniform(k4, (1, dout), dtype, -s2, s2)
    return w1, b1, w2, b2


def _reference_rhs(y, w1, b1, w2, b2):
    hp = jax.lax.Precision.HIGHEST
    h = jnp.maximum(jnp.dot(y, w1, precision=hp) + b1, 0.0)
    return jnp.dot(h, w2, precision=hp) + b2


if __name__ == "__main__":
    key = jax.random.PRNGKey(0)
    kp, ky = jax.random.split(key)

    B = 256                                   # batch sized to fill (8,128) vregs
    y = jax.random.normal(ky, (B, 3), jnp.float32)
    t = jnp.float32(0.0)                      # unused by forward (API parity)

    w1, b1, w2, b2 = init_params(kp)

    # 1) Single RHS evaluation == ODEFunc.forward(t, y)
    out = jax.block_until_ready(odefunc_forward(t, y, w1, b1, w2, b2))
    ref = _reference_rhs(y, w1, b1, w2, b2)
    assert out.shape == (B, 3)
    assert jnp.allclose(out, ref, atol=1e-4, rtol=1e-4), \
        float(jnp.max(jnp.abs(out - ref)))

    # 2) Fused time loop: 32 Euler steps in one pallas_call (weights stay in VMEM).
    num_steps, dt = 32, 0.05
    yT = jax.block_until_ready(
        odefunc_euler_rollout(y, w1, b1, w2, b2, num_steps=num_steps, dt=dt))
    y_ref = y
    for _ in range(num_steps):
        y_ref = y_ref + dt * _reference_rhs(y_ref, w1, b1, w2, b2)
    assert yT.shape == (B, 3)
    assert jnp.allclose(yT, y_ref, atol=1e-3, rtol=1e-3), \
        float(jnp.max(jnp.abs(yT - y_ref)))

    print("KERNEL_OK")
</pallas_src>

<mosaic_0001>
module attributes {stable_mosaic.version = 11 : i64} {
  func.func @odefunc_kernel(%arg0: i32, %arg1: memref<256x3xf32, #tpu.memory_space<vmem>>, %arg2: memref<3x128xf32, #tpu.memory_space<vmem>>, %arg3: memref<1x128xf32, #tpu.memory_space<vmem>>, %arg4: memref<128x128xf32, #tpu.memory_space<vmem>>, %arg5: memref<1x128xf32, #tpu.memory_space<vmem>>, %arg6: memref<256x128xf32, #tpu.memory_space<vmem>>) attributes {dimension_semantics = [#tpu.dimension_semantics<parallel>], iteration_bounds = array<i64: 1>, scalar_prefetch = 0 : i64, scratch_operands = 0 : i64, tpu.core_type = #tpu.core_type<tc>, window_params = [{transform_indices = @transform_0, window_bounds = array<i64: 256, 3>}, {pipeline_mode = #tpu.pipeline_mode<synchronous>, transform_indices = @transform_1, window_bounds = array<i64: 3, 128>}, {pipeline_mode = #tpu.pipeline_mode<synchronous>, transform_indices = @transform_2, window_bounds = array<i64: 1, 128>}, {pipeline_mode = #tpu.pipeline_mode<synchronous>, transform_indices = @transform_3, window_bounds = array<i64: 128, 128>}, {pipeline_mode = #tpu.pipeline_mode<synchronous>, transform_indices = @transform_4, window_bounds = array<i64: 1, 128>}, {transform_indices = @transform_5, window_bounds = array<i64: 256, 128>}]} {
    %c0 = arith.constant 0 : index
    %c0_0 = arith.constant 0 : index
    %0 = vector.load %arg2[%c0, %c0_0] : memref<3x128xf32, #tpu.memory_space<vmem>>, vector<3x128xf32>
    %c0_1 = arith.constant 0 : index
    %c0_2 = arith.constant 0 : index
    %1 = vector.load %arg1[%c0_1, %c0_2] : memref<256x3xf32, #tpu.memory_space<vmem>>, vector<256x3xf32>
    %2 = vector.extract_strided_slice %0 {offsets = [0, 0], sizes = [1, 128], strides = [1, 1]} : vector<3x128xf32> to vector<1x128xf32>
    %3 = vector.extract_strided_slice %0 {offsets = [1, 0], sizes = [1, 128], strides = [1, 1]} : vector<3x128xf32> to vector<1x128xf32>
    %4 = vector.extract_strided_slice %0 {offsets = [2, 0], sizes = [1, 128], strides = [1, 1]} : vector<3x128xf32> to vector<1x128xf32>
    %c0_3 = arith.constant 0 : index
    %c0_4 = arith.constant 0 : index
    %5 = vector.load %arg3[%c0_3, %c0_4] : memref<1x128xf32, #tpu.memory_space<vmem>>, vector<1x128xf32>
    %c0_5 = arith.constant 0 : index
    %c0_6 = arith.constant 0 : index
    %6 = vector.load %arg4[%c0_5, %c0_6] : memref<128x128xf32, #tpu.memory_space<vmem>>, vector<128x128xf32>
    %c0_7 = arith.constant 0 : index
    %c0_8 = arith.constant 0 : index
    %7 = vector.load %arg5[%c0_7, %c0_8] : memref<1x128xf32, #tpu.memory_space<vmem>>, vector<1x128xf32>
    %8 = vector.extract_strided_slice %1 {offsets = [0, 0], sizes = [256, 1], strides = [1, 1]} : vector<256x3xf32> to vector<256x1xf32>
    %9 = vector.broadcast %8 : vector<256x1xf32> to vector<256x128xf32>
    %10 = vector.broadcast %2 : vector<1x128xf32> to vector<256x128xf32>
    %11 = arith.mulf %9, %10 : vector<256x128xf32>
    %12 = vector.extract_strided_slice %1 {offsets = [0, 1], sizes = [256, 1], strides = [1, 1]} : vector<256x3xf32> to vector<256x1xf32>
    %13 = vector.broadcast %12 : vector<256x1xf32> to vector<256x128xf32>
    %14 = vector.broadcast %3 : vector<1x128xf32> to vector<256x128xf32>
    %15 = arith.mulf %13, %14 : vector<256x128xf32>
    %16 = arith.addf %11, %15 : vector<256x128xf32>
    %17 = vector.extract_strided_slice %1 {offsets = [0, 2], sizes = [256, 1], strides = [1, 1]} : vector<256x3xf32> to vector<256x1xf32>
    %18 = vector.broadcast %17 : vector<256x1xf32> to vector<256x128xf32>
    %19 = vector.broadcast %4 : vector<1x128xf32> to vector<256x128xf32>
    %20 = arith.mulf %18, %19 : vector<256x128xf32>
    %21 = arith.addf %16, %20 : vector<256x128xf32>
    %22 = vector.broadcast %5 : vector<1x128xf32> to vector<256x128xf32>
    %23 = arith.addf %21, %22 : vector<256x128xf32>
    %cst = arith.constant 0.000000e+00 : f32
    %24 = vector.broadcast %cst : f32 to vector<256x128xf32>
    %25 = arith.maximumf %23, %24 : vector<256x128xf32>
    %cst_9 = arith.constant dense<0.000000e+00> : vector<256x128xf32>
    %26 = tpu.matmul %25, %6, %cst_9 {dimension_numbers = #tpu.dot_dimension_numbers<[1], [0], [0], [1], [0, 0, 1, 1], [], []>} : vector<256x128xf32>, vector<128x128xf32>, vector<256x128xf32> -> vector<256x128xf32>
    %27 = vector.broadcast %7 : vector<1x128xf32> to vector<256x128xf32>
    %28 = arith.addf %26, %27 : vector<256x128xf32>
    %c0_10 = arith.constant 0 : index
    %c0_11 = arith.constant 0 : index
    %29 = vector.load %arg6[%c0_10, %c0_11] : memref<256x128xf32, #tpu.memory_space<vmem>>, vector<256x128xf32>
    tpu.vector_store %arg6[%c0_10, %c0_11], %28 {strides = array<i32>} : memref<256x128xf32, #tpu.memory_space<vmem>>, vector<256x128xf32>,
    return
  }
  func.func @transform_0(%arg0: i32) -> (i32, i32) {
    %c0_i32 = arith.constant 0 : i32
    %c0_i32_0 = arith.constant 0 : i32
    return %arg0, %c0_i32 : i32, i32
  }
  func.func @transform_1(%arg0: i32) -> (i32, i32) {
    %c0_i32 = arith.constant 0 : i32
    %c0_i32_0 = arith.constant 0 : i32
    %c0_i32_1 = arith.constant 0 : i32
    return %c0_i32, %c0_i32_0 : i32, i32
  }
  func.func @transform_2(%arg0: i32) -> (i32, i32) {
    %c0_i32 = arith.constant 0 : i32
    %c0_i32_0 = arith.constant 0 : i32
    %c0_i32_1 = arith.constant 0 : i32
    return %c0_i32, %c0_i32_0 : i32, i32
  }
  func.func @transform_3(%arg0: i32) -> (i32, i32) {
    %c0_i32 = arith.constant 0 : i32
    %c0_i32_0 = arith.constant 0 : i32
    %c0_i32_1 = arith.constant 0 : i32
    return %c0_i32, %c0_i32_0 : i32, i32
  }
  func.func @transform_4(%arg0: i32) -> (i32, i32) {
    %c0_i32 = arith.constant 0 : i32
    %c0_i32_0 = arith.constant 0 : i32
    %c0_i32_1 = arith.constant 0 : i32
    return %c0_i32, %c0_i32_0 : i32, i32
  }
  func.func @transform_5(%arg0: i32) -> (i32, i32) {
    %c0_i32 = arith.constant 0 : i32
    %c0_i32_0 = arith.constant 0 : i32
    return %arg0, %c0_i32 : i32, i32
  }
}

</mosaic_0001>

<llo_original>
// kernel: tpu_custom_call.1
$region0: #{tpu_custom_call.1}
  #allocation0 [shape = 'u32[]', space=smem, size = 0x4, offset = 0x4, fixed_abs, tag = 'smem constant byte address 0x4 - core index']
  #allocation1 [shape = 'u32[144,128]{1,0:T(1,128)}', space=vmem, size = 0x12000, scoped, tag = 'internal scratch']
  %s0 = inlined_call_operand.vmem [shape: f32[256,3], index: 0, kind: input, shape index: {}]
  %s1 = inlined_call_operand.vmem [shape: f32[3,128], index: 1, kind: input, shape index: {}]
  %s2 = inlined_call_operand.vmem [shape: f32[1,128], index: 2, kind: input, shape index: {}]
  %s3 = inlined_call_operand.vmem [shape: f32[128,128], index: 3, kind: input, shape index: {}]
  %s4 = inlined_call_operand.vmem [shape: f32[1,128], index: 4, kind: input, shape index: {}]
  %s5 = inlined_call_operand.hbm [shape: f32[256,128], index: 5, kind: output, shape index: {}]
  %s6 = sld [smem:[#allocation0]]
  $region30: #{tpu_custom_call.1} parent=0
    _
  %s8 = ssub.s32 1, %s6
  %s9 = scalar_select 0, %s8, %s6
  $region1: #{tpu_custom_call.1} parent=0
    #allocation2 [shape = 'u8[131072]{0}', space=vmem, size = 0x20000, scoped, tag = 'output window, operand 0, single buffered']
    #allocation3 [shape = 's32[1]{0}', space=sflag, size = 0x4, scoped, tag = 'scoped memory for tpu_custom_call.1']
    %10 = vsyncpa [#allocation3], 0
    // Predicated region
    $region2: #{tpu_custom_call.1} parent=1 // pred_check
      _
    $region3: #{tpu_custom_call.1} parent=1 // pred_check_branch
      %12 = sbr.rel (0) target = $region5
    $region4: #{tpu_custom_call.1} parent=1 // pred_region
      _
    $region5: #{tpu_custom_call.1} parent=1 // pred_fallthru
      _
    // Predicated region
    $region6: #{tpu_custom_call.1} parent=1 // pred_check
      _
    $region7: #{tpu_custom_call.1} parent=1 // pred_check_branch
      %14 = sbr.rel (0) target = $region9
    $region8: #{tpu_custom_call.1} parent=1 // pred_region
      _
    $region9: #{tpu_custom_call.1} parent=1 // pred_fallthru
      _
    // Predicated region
    $region10: #{tpu_custom_call.1} parent=1 // pred_check
      _
    $region11: #{tpu_custom_call.1} parent=1 // pred_check_branch
      %16 = sbr.rel (0) target = $region13
    $region12: #{tpu_custom_call.1} parent=1 // pred_region
      _
    $region13: #{tpu_custom_call.1} parent=1 // pred_fallthru
      _
    // Predicated region
    $region14: #{tpu_custom_call.1} parent=1 // pred_check
      _
    $region15: #{tpu_custom_call.1} parent=1 // pred_check_branch
      %18 = sbr.rel (0) target = $region17
    $region16: #{tpu_custom_call.1} parent=1 // pred_region
      _
    $region17: #{tpu_custom_call.1} parent=1 // pred_fallthru
      _
    // Predicated region
    $region18: #{tpu_custom_call.1} parent=1 // pred_check
      _
    $region19: #{tpu_custom_call.1} parent=1 // pred_check_branch
      %20 = sbr.rel (0) target = $region21
    $region20: #{tpu_custom_call.1} parent=1 // pred_region
      _
    $region21: #{tpu_custom_call.1} parent=1 // pred_fallthru
      _
    %v21 = vld [vmem:[%s1] sm:$0x7]
    %v22 = vld [vmem:[%s0] sm:$0xff]
    %v23 = vld [vmem:[%s0 + $0x8] sm:$0xff]
    %v24 = vld [vmem:[%s0 + $0x10] sm:$0xff]
    %v25 = vld [vmem:[%s0 + $0x18] sm:$0xff]
    %v26 = vld [vmem:[%s0 + $0x20] sm:$0xff]
    %v27 = vld [vmem:[%s0 + $0x28] sm:$0xff]
    %v28 = vld [vmem:[%s0 + $0x30] sm:$0xff]
    %v29 = vld [vmem:[%s0 + $0x38] sm:$0xff]
    %v30 = vld [vmem:[%s0 + $0x40] sm:$0xff]
    %v31 = vld [vmem:[%s0 + $0x48] sm:$0xff]
    %v32 = vld [vmem:[%s0 + $0x50] sm:$0xff]
    %v33 = vld [vmem:[%s0 + $0x58] sm:$0xff]
    %v34 = vld [vmem:[%s0 + $0x60] sm:$0xff]
    %v35 = vld [vmem:[%s0 + $0x68] sm:$0xff]
    %v36 = vld [vmem:[%s0 + $0x70] sm:$0xff]
    %v37 = vld [vmem:[%s0 + $0x78] sm:$0xff]
    %v38 = vld [vmem:[%s0 + $0x80] sm:$0xff]
    %v39 = vld [vmem:[%s0 + $0x88] sm:$0xff]
    %v40 = vld [vmem:[%s0 + $0x90] sm:$0xff]
    %v41 = vld [vmem:[%s0 + $0x98] sm:$0xff]
    %v42 = vld [vmem:[%s0 + $0xa0] sm:$0xff]
    %v43 = vld [vmem:[%s0 + $0xa8] sm:$0xff]
    %v44 = vld [vmem:[%s0 + $0xb0] sm:$0xff]
    %v45 = vld [vmem:[%s0 + $0xb8] sm:$0xff]
    %v46 = vld [vmem:[%s0 + $0xc0] sm:$0xff]
    %v47 = vld [vmem:[%s0 + $0xc8] sm:$0xff]
    %v48 = vld [vmem:[%s0 + $0xd0] sm:$0xff]
    %v49 = vld [vmem:[%s0 + $0xd8] sm:$0xff]
    %v50 = vld [vmem:[%s0 + $0xe0] sm:$0xff]
    %v51 = vld [vmem:[%s0 + $0xe8] sm:$0xff]
    %v52 = vld [vmem:[%s0 + $0xf0] sm:$0xff]
    %v53 = vld [vmem:[%s0 + $0xf8] sm:$0xff]
    %v54 = vld [vmem:[%s2] sm:$0x1]
    %v55 = vld [vmem:[%s3] sm:$0xff]
    %v56 = vld [vmem:[%s3 + $0x8] sm:$0xff]
    %v57 = vld [vmem:[%s3 + $0x10] sm:$0xff]
    %v58 = vld [vmem:[%s3 + $0x18] sm:$0xff]
    %v59 = vld [vmem:[%s3 + $0x20] sm:$0xff]
    %v60 = vld [vmem:[%s3 + $0x28] sm:$0xff]
    %v61 = vld [vmem:[%s3 + $0x30] sm:$0xff]
    %v62 = vld [vmem:[%s3 + $0x38] sm:$0xff]
    %v63 = vld [vmem:[%s3 + $0x40] sm:$0xff]
    %v64 = vld [vmem:[%s3 + $0x48] sm:$0xff]
    %v65 = vld [vmem:[%s3 + $0x50] sm:$0xff]
    %v66 = vld [vmem:[%s3 + $0x58] sm:$0xff]
    %v67 = vld [vmem:[%s3 + $0x60] sm:$0xff]
    %v68 = vld [vmem:[%s3 + $0x68] sm:$0xff]
    %v69 = vld [vmem:[%s3 + $0x70] sm:$0xff]
    %v70 = vld [vmem:[%s3 + $0x78] sm:$0xff]
    %v71 = vld [vmem:[%s4] sm:$0x1]
    %73 = vset.pattern.permute.xlu0 0
    %74 = vperm.xlu0 %73, %v22
    %v75 = vpop.permute.xlu0 %74
    %78 = vset.pattern.permute.xlu0 0
    %79 = vperm.xlu0 %78, %v23
    %v80 = vpop.permute.xlu0 %79
    %83 = vset.pattern.permute.xlu0 0
    %84 = vperm.xlu0 %83, %v24
    %v85 = vpop.permute.xlu0 %84
    %88 = vset.pattern.permute.xlu0 0
    %89 = vperm.xlu0 %88, %v25
    %v90 = vpop.permute.xlu0 %89
    %93 = vset.pattern.permute.xlu0 0
    %94 = vperm.xlu0 %93, %v26
    %v95 = vpop.permute.xlu0 %94
    %98 = vset.pattern.permute.xlu0 0
    %99 = vperm.xlu0 %98, %v27
    %v100 = vpop.permute.xlu0 %99
    %103 = vset.pattern.permute.xlu0 0
    %104 = vperm.xlu0 %103, %v28
    %v105 = vpop.permute.xlu0 %104
    %108 = vset.pattern.permute.xlu0 0
    %109 = vperm.xlu0 %108, %v29
    %v110 = vpop.permute.xlu0 %109
    %113 = vset.pattern.permute.xlu0 0
    %114 = vperm.xlu0 %113, %v30
    %v115 = vpop.permute.xlu0 %114
    %118 = vset.pattern.permute.xlu0 0
    %119 = vperm.xlu0 %118, %v31
    %v120 = vpop.permute.xlu0 %119
    %123 = vset.pattern.permute.xlu0 0
    %124 = vperm.xlu0 %123, %v32
    %v125 = vpop.permute.xlu0 %124
    %128 = vset.pattern.permute.xlu0 0
    %129 = vperm.xlu0 %128, %v33
    %v130 = vpop.permute.xlu0 %129
    %133 = vset.pattern.permute.xlu0 0
    %134 = vperm.xlu0 %133, %v34
    %v135 = vpop.permute.xlu0 %134
    %138 = vset.pattern.permute.xlu0 0
    %139 = vperm.xlu0 %138, %v35
    %v140 = vpop.permute.xlu0 %139
    %143 = vset.pattern.permute.xlu0 0
    %144 = vperm.xlu0 %143, %v36
    %v145 = vpop.permute.xlu0 %144
    %148 = vset.pattern.permute.xlu0 0
    %149 = vperm.xlu0 %148, %v37
    %v150 = vpop.permute.xlu0 %149
    %153 = vset.pattern.permute.xlu0 0
    %154 = vperm.xlu0 %153, %v38
    %v155 = vpop.permute.xlu0 %154
    %158 = vset.pattern.permute.xlu0 0
    %159 = vperm.xlu0 %158, %v39
    %v160 = vpop.permute.xlu0 %159
    %163 = vset.pattern.permute.xlu0 0
    %164 = vperm.xlu0 %163, %v40
    %v165 = vpop.permute.xlu0 %164
    %168 = vset.pattern.permute.xlu0 0
    %169 = vperm.xlu0 %168, %v41
    %v170 = vpop.permute.xlu0 %169
    %173 = vset.pattern.permute.xlu0 0
    %174 = vperm.xlu0 %173, %v42
    %v175 = vpop.permute.xlu0 %174
    %178 = vset.pattern.permute.xlu0 0
    %179 = vperm.xlu0 %178, %v43
    %v180 = vpop.permute.xlu0 %179
    %183 = vset.pattern.permute.xlu0 0
    %184 = vperm.xlu0 %183, %v44
    %v185 = vpop.permute.xlu0 %184
    %188 = vset.pattern.permute.xlu0 0
    %189 = vperm.xlu0 %188, %v45
    %v190 = vpop.permute.xlu0 %189
    %193 = vset.pattern.permute.xlu0 0
    %194 = vperm.xlu0 %193, %v46
    %v195 = vpop.permute.xlu0 %194
    %198 = vset.pattern.permute.xlu0 0
    %199 = vperm.xlu0 %198, %v47
    %v200 = vpop.permute.xlu0 %199
    %203 = vset.pattern.permute.xlu0 0
    %204 = vperm.xlu0 %203, %v48
    %v205 = vpop.permute.xlu0 %204
    %208 = vset.pattern.permute.xlu0 0
    %209 = vperm.xlu0 %208, %v49
    %v210 = vpop.permute.xlu0 %209
    %213 = vset.pattern.permute.xlu0 0
    %214 = vperm.xlu0 %213, %v50
    %v215 = vpop.permute.xlu0 %214
    %218 = vset.pattern.permute.xlu0 0
    %219 = vperm.xlu0 %218, %v51
    %v220 = vpop.permute.xlu0 %219
    %223 = vset.pattern.permute.xlu0 0
    %224 = vperm.xlu0 %223, %v52
    %v225 = vpop.permute.xlu0 %224
    %228 = vset.pattern.permute.xlu0 0
    %229 = vperm.xlu0 %228, %v53
    %v230 = vpop.permute.xlu0 %229
    %v232 = vlaneseq
    %v233 = vshrl.u32 %v232, 7
    %v234 = vsub.s32 0, %v233
    %v235 = vrot.slane %v21, %v234
    %v236 = vmul.f32 %v75, %v235
    %v237 = vmul.f32 %v80, %v235
    %v238 = vmul.f32 %v85, %v235
    %v239 = vmul.f32 %v90, %v235
    %v240 = vmul.f32 %v95, %v235
    %v241 = vmul.f32 %v100, %v235
    %v242 = vmul.f32 %v105, %v235
    %v243 = vmul.f32 %v110, %v235
    %v244 = vmul.f32 %v115, %v235
    %v245 = vmul.f32 %v120, %v235
    %v246 = vmul.f32 %v125, %v235
    %v247 = vmul.f32 %v130, %v235
    %v248 = vmul.f32 %v135, %v235
    %v249 = vmul.f32 %v140, %v235
    %v250 = vmul.f32 %v145, %v235
    %v251 = vmul.f32 %v150, %v235
    %v252 = vmul.f32 %v155, %v235
    %v253 = vmul.f32 %v160, %v235
    %v254 = vmul.f32 %v165, %v235
    %v255 = vmul.f32 %v170, %v235
    %v256 = vmul.f32 %v175, %v235
    %v257 = vmul.f32 %v180, %v235
    %v258 = vmul.f32 %v185, %v235
    %v259 = vmul.f32 %v190, %v235
    %v260 = vmul.f32 %v195, %v235
    %v261 = vmul.f32 %v200, %v235
    %v262 = vmul.f32 %v205, %v235
    %v263 = vmul.f32 %v210, %v235
    %v264 = vmul.f32 %v215, %v235
    %v265 = vmul.f32 %v220, %v235
    %v266 = vmul.f32 %v225, %v235
    %v267 = vmul.f32 %v230, %v235
    %268 = vset.pattern.permute.xlu0 1
    %269 = vperm.xlu0 %268, %v22
    %v270 = vpop.permute.xlu0 %269
    %272 = vset.pattern.permute.xlu0 1
    %273 = vperm.xlu0 %272, %v23
    %v274 = vpop.permute.xlu0 %273
    %276 = vset.pattern.permute.xlu0 1
    %277 = vperm.xlu0 %276, %v24
    %v278 = vpop.permute.xlu0 %277
    %280 = vset.pattern.permute.xlu0 1
    %281 = vperm.xlu0 %280, %v25
    %v282 = vpop.permute.xlu0 %281
    %284 = vset.pattern.permute.xlu0 1
    %285 = vperm.xlu0 %284, %v26
    %v286 = vpop.permute.xlu0 %285
    %288 = vset.pattern.permute.xlu0 1
    %289 = vperm.xlu0 %288, %v27
    %v290 = vpop.permute.xlu0 %289
    %292 = vset.pattern.permute.xlu0 1
    %293 = vperm.xlu0 %292, %v28
    %v294 = vpop.permute.xlu0 %293
    %296 = vset.pattern.permute.xlu0 1
    %297 = vperm.xlu0 %296, %v29
    %v298 = vpop.permute.xlu0 %297
    %300 = vset.pattern.permute.xlu0 1
    %301 = vperm.xlu0 %300, %v30
    %v302 = vpop.permute.xlu0 %301
    %304 = vset.pattern.permute.xlu0 1
    %305 = vperm.xlu0 %304, %v31
    %v306 = vpop.permute.xlu0 %305
    %308 = vset.pattern.permute.xlu0 1
    %309 = vperm.xlu0 %308, %v32
    %v310 = vpop.permute.xlu0 %309
    %312 = vset.pattern.permute.xlu0 1
    %313 = vperm.xlu0 %312, %v33
    %v314 = vpop.permute.xlu0 %313
    %316 = vset.pattern.permute.xlu0 1
    %317 = vperm.xlu0 %316, %v34
    %v318 = vpop.permute.xlu0 %317
    %320 = vset.pattern.permute.xlu0 1
    %321 = vperm.xlu0 %320, %v35
    %v322 = vpop.permute.xlu0 %321
    %324 = vset.pattern.permute.xlu0 1
    %325 = vperm.xlu0 %324, %v36
    %v326 = vpop.permute.xlu0 %325
    %328 = vset.pattern.permute.xlu0 1
    %329 = vperm.xlu0 %328, %v37
    %v330 = vpop.permute.xlu0 %329
    %332 = vset.pattern.permute.xlu0 1
    %333 = vperm.xlu0 %332, %v38
    %v334 = vpop.permute.xlu0 %333
    %336 = vset.pattern.permute.xlu0 1
    %337 = vperm.xlu0 %336, %v39
    %v338 = vpop.permute.xlu0 %337
    %340 = vset.pattern.permute.xlu0 1
    %341 = vperm.xlu0 %340, %v40
    %v342 = vpop.permute.xlu0 %341
    %344 = vset.pattern.permute.xlu0 1
    %345 = vperm.xlu0 %344, %v41
    %v346 = vpop.permute.xlu0 %345
    %348 = vset.pattern.permute.xlu0 1
    %349 = vperm.xlu0 %348, %v42
    %v350 = vpop.permute.xlu0 %349
    %352 = vset.pattern.permute.xlu0 1
    %353 = vperm.xlu0 %352, %v43
    %v354 = vpop.permute.xlu0 %353
    %356 = vset.pattern.permute.xlu0 1
    %357 = vperm.xlu0 %356, %v44
    %v358 = vpop.permute.xlu0 %357
    %360 = vset.pattern.permute.xlu0 1
    %361 = vperm.xlu0 %360, %v45
    %v362 = vpop.permute.xlu0 %361
    %364 = vset.pattern.permute.xlu0 1
    %365 = vperm.xlu0 %364, %v46
    %v366 = vpop.permute.xlu0 %365
    %368 = vset.pattern.permute.xlu0 1
    %369 = vperm.xlu0 %368, %v47
    %v370 = vpop.permute.xlu0 %369
    %372 = vset.pattern.permute.xlu0 1
    %373 = vperm.xlu0 %372, %v48
    %v374 = vpop.permute.xlu0 %373
    %376 = vset.pattern.permute.xlu0 1
    %377 = vperm.xlu0 %376, %v49
    %v378 = vpop.permute.xlu0 %377
    %380 = vset.pattern.permute.xlu0 1
    %381 = vperm.xlu0 %380, %v50
    %v382 = vpop.permute.xlu0 %381
    %384 = vset.pattern.permute.xlu0 1
    %385 = vperm.xlu0 %384, %v51
    %v386 = vpop.permute.xlu0 %385
    %388 = vset.pattern.permute.xlu0 1
    %389 = vperm.xlu0 %388, %v52
    %v390 = vpop.permute.xlu0 %389
    %392 = vset.pattern.permute.xlu0 1
    %393 = vperm.xlu0 %392, %v53
    %v394 = vpop.permute.xlu0 %393
    %v396 = vlaneseq
    %v397 = vshrl.u32 %v396, 7
    %v398 = vsub.s32 1, %v397
    %v399 = vrot.slane %v21, %v398
    %v400 = vmul.f32 %v270, %v399
    %v401 = vmul.f32 %v274, %v399
    %v402 = vmul.f32 %v278, %v399
    %v403 = vmul.f32 %v282, %v399
    %v404 = vmul.f32 %v286, %v399
    %v405 = vmul.f32 %v290, %v399
    %v406 = vmul.f32 %v294, %v399
    %v407 = vmul.f32 %v298, %v399
    %v408 = vmul.f32 %v302, %v399
    %v409 = vmul.f32 %v306, %v399
    %v410 = vmul.f32 %v310, %v399
    %v411 = vmul.f32 %v314, %v399
    %v412 = vmul.f32 %v318, %v399
    %v413 = vmul.f32 %v322, %v399
    %v414 = vmul.f32 %v326, %v399
    %v415 = vmul.f32 %v330, %v399
    %v416 = vmul.f32 %v334, %v399
    %v417 = vmul.f32 %v338, %v399
    %v418 = vmul.f32 %v342, %v399
    %v419 = vmul.f32 %v346, %v399
    %v420 = vmul.f32 %v350, %v399
    %v421 = vmul.f32 %v354, %v399
    %v422 = vmul.f32 %v358, %v399
    %v423 = vmul.f32 %v362, %v399
    %v424 = vmul.f32 %v366, %v399
    %v425 = vmul.f32 %v370, %v399
    %v426 = vmul.f32 %v374, %v399
    %v427 = vmul.f32 %v378, %v399
    %v428 = vmul.f32 %v382, %v399
    %v429 = vmul.f32 %v386, %v399
    %v430 = vmul.f32 %v390, %v399
    %v431 = vmul.f32 %v394, %v399
    %v432 = vadd.f32 %v236, %v400
    %v433 = vadd.f32 %v237, %v401
    %v434 = vadd.f32 %v238, %v402
    %v435 = vadd.f32 %v239, %v403
    %v436 = vadd.f32 %v240, %v404
    %v437 = vadd.f32 %v241, %v405
    %v438 = vadd.f32 %v242, %v406
    %v439 = vadd.f32 %v243, %v407
    %v440 = vadd.f32 %v244, %v408
    %v441 = vadd.f32 %v245, %v409
    %v442 = vadd.f32 %v246, %v410
    %v443 = vadd.f32 %v247, %v411
    %v444 = vadd.f32 %v248, %v412
    %v445 = vadd.f32 %v249, %v413
    %v446 = vadd.f32 %v250, %v414
    %v447 = vadd.f32 %v251, %v415
    %v448 = vadd.f32 %v252, %v416
    %v449 = vadd.f32 %v253, %v417
    %v450 = vadd.f32 %v254, %v418
    %v451 = vadd.f32 %v255, %v419
    %v452 = vadd.f32 %v256, %v420
    %v453 = vadd.f32 %v257, %v421
    %v454 = vadd.f32 %v258, %v422
    %v455 = vadd.f32 %v259, %v423
    %v456 = vadd.f32 %v260, %v424
    %v457 = vadd.f32 %v261, %v425
    %v458 = vadd.f32 %v262, %v426
    %v459 = vadd.f32 %v263, %v427
    %v460 = vadd.f32 %v264, %v428
    %v461 = vadd.f32 %v265, %v429
    %v462 = vadd.f32 %v266, %v430
    %v463 = vadd.f32 %v267, %v431
    %464 = vset.pattern.permute.xlu0 2
    %465 = vperm.xlu0 %464, %v22
    %v466 = vpop.permute.xlu0 %465
    %468 = vset.pattern.permute.xlu0 2
    %469 = vperm.xlu0 %468, %v23
    %v470 = vpop.permute.xlu0 %469
    %472 = vset.pattern.permute.xlu0 2
    %473 = vperm.xlu0 %472, %v24
    %v474 = vpop.permute.xlu0 %473
    %476 = vset.pattern.permute.xlu0 2
    %477 = vperm.xlu0 %476, %v25
    %v478 = vpop.permute.xlu0 %477
    %480 = vset.pattern.permute.xlu0 2
    %481 = vperm.xlu0 %480, %v26
    %v482 = vpop.permute.xlu0 %481
    %484 = vset.pattern.permute.xlu0 2
    %485 = vperm.xlu0 %484, %v27
    %v486 = vpop.permute.xlu0 %485
    %488 = vset.pattern.permute.xlu0 2
    %489 = vperm.xlu0 %488, %v28
    %v490 = vpop.permute.xlu0 %489
    %492 = vset.pattern.permute.xlu0 2
    %493 = vperm.xlu0 %492, %v29
    %v494 = vpop.permute.xlu0 %493
    %496 = vset.pattern.permute.xlu0 2
    %497 = vperm.xlu0 %496, %v30
    %v498 = vpop.permute.xlu0 %497
    %500 = vset.pattern.permute.xlu0 2
    %501 = vperm.xlu0 %500, %v31
    %v502 = vpop.permute.xlu0 %501
    %504 = vset.pattern.permute.xlu0 2
    %505 = vperm.xlu0 %504, %v32
    %v506 = vpop.permute.xlu0 %505
    %508 = vset.pattern.permute.xlu0 2
    %509 = vperm.xlu0 %508, %v33
    %v510 = vpop.permute.xlu0 %509
    %512 = vset.pattern.permute.xlu0 2
    %513 = vperm.xlu0 %512, %v34
    %v514 = vpop.permute.xlu0 %513
    %516 = vset.pattern.permute.xlu0 2
    %517 = vperm.xlu0 %516, %v35
    %v518 = vpop.permute.xlu0 %517
    %520 = vset.pattern.permute.xlu0 2
    %521 = vperm.xlu0 %520, %v36
    %v522 = vpop.permute.xlu0 %521
    %524 = vset.pattern.permute.xlu0 2
    %525 = vperm.xlu0 %524, %v37
    %v526 = vpop.permute.xlu0 %525
    %528 = vset.pattern.permute.xlu0 2
    %529 = vperm.xlu0 %528, %v38
    %v530 = vpop.permute.xlu0 %529
    %532 = vset.pattern.permute.xlu0 2
    %533 = vperm.xlu0 %532, %v39
    %v534 = vpop.permute.xlu0 %533
    %536 = vset.pattern.permute.xlu0 2
    %537 = vperm.xlu0 %536, %v40
    %v538 = vpop.permute.xlu0 %537
    %540 = vset.pattern.permute.xlu0 2
    %541 = vperm.xlu0 %540, %v41
    %v542 = vpop.permute.xlu0 %541
    %544 = vset.pattern.permute.xlu0 2
    %545 = vperm.xlu0 %544, %v42
    %v546 = vpop.permute.xlu0 %545
    %548 = vset.pattern.permute.xlu0 2
    %549 = vperm.xlu0 %548, %v43
    %v550 = vpop.permute.xlu0 %549
    %552 = vset.pattern.permute.xlu0 2
    %553 = vperm.xlu0 %552, %v44
    %v554 = vpop.permute.xlu0 %553
    %556 = vset.pattern.permute.xlu0 2
    %557 = vperm.xlu0 %556, %v45
    %v558 = vpop.permute.xlu0 %557
    %560 = vset.pattern.permute.xlu0 2
    %561 = vperm.xlu0 %560, %v46
    %v562 = vpop.permute.xlu0 %561
    %564 = vset.pattern.permute.xlu0 2
    %565 = vperm.xlu0 %564, %v47
    %v566 = vpop.permute.xlu0 %565
    %568 = vset.pattern.permute.xlu0 2
    %569 = vperm.xlu0 %568, %v48
    %v570 = vpop.permute.xlu0 %569
    %572 = vset.pattern.permute.xlu0 2
    %573 = vperm.xlu0 %572, %v49
    %v574 = vpop.permute.xlu0 %573
    %576 = vset.pattern.permute.xlu0 2
    %577 = vperm.xlu0 %576, %v50
    %v578 = vpop.permute.xlu0 %577
    %580 = vset.pattern.permute.xlu0 2
    %581 = vperm.xlu0 %580, %v51
    %v582 = vpop.permute.xlu0 %581
    %584 = vset.pattern.permute.xlu0 2
    %585 = vperm.xlu0 %584, %v52
    %v586 = vpop.permute.xlu0 %585
    %588 = vset.pattern.permute.xlu0 2
    %589 = vperm.xlu0 %588, %v53
    %v590 = vpop.permute.xlu0 %589
    %v592 = vlaneseq
    %v593 = vshrl.u32 %v592, 7
    %v594 = vsub.s32 2, %v593
    %v595 = vrot.slane %v21, %v594
    %v596 = vmul.f32 %v466, %v595
    %v597 = vmul.f32 %v470, %v595
    %v598 = vmul.f32 %v474, %v595
    %v599 = vmul.f32 %v478, %v595
    %v600 = vmul.f32 %v482, %v595
    %v601 = vmul.f32 %v486, %v595
    %v602 = vmul.f32 %v490, %v595
    %v603 = vmul.f32 %v494, %v595
    %v604 = vmul.f32 %v498, %v595
    %v605 = vmul.f32 %v502, %v595
    %v606 = vmul.f32 %v506, %v595
    %v607 = vmul.f32 %v510, %v595
    %v608 = vmul.f32 %v514, %v595
    %v609 = vmul.f32 %v518, %v595
    %v610 = vmul.f32 %v522, %v595
    %v611 = vmul.f32 %v526, %v595
    %v612 = vmul.f32 %v530, %v595
    %v613 = vmul.f32 %v534, %v595
    %v614 = vmul.f32 %v538, %v595
    %v615 = vmul.f32 %v542, %v595
    %v616 = vmul.f32 %v546, %v595
    %v617 = vmul.f32 %v550, %v595
    %v618 = vmul.f32 %v554, %v595
    %v619 = vmul.f32 %v558, %v595
    %v620 = vmul.f32 %v562, %v595
    %v621 = vmul.f32 %v566, %v595
    %v622 = vmul.f32 %v570, %v595
    %v623 = vmul.f32 %v574, %v595
    %v624 = vmul.f32 %v578, %v595
    %v625 = vmul.f32 %v582, %v595
    %v626 = vmul.f32 %v586, %v595
    %v627 = vmul.f32 %v590, %v595
    %v628 = vadd.f32 %v432, %v596
    %v629 = vadd.f32 %v433, %v597
    %v630 = vadd.f32 %v434, %v598
    %v631 = vadd.f32 %v435, %v599
    %v632 = vadd.f32 %v436, %v600
    %v633 = vadd.f32 %v437, %v601
    %v634 = vadd.f32 %v438, %v602
    %v635 = vadd.f32 %v439, %v603
    %v636 = vadd.f32 %v440, %v604
    %v637 = vadd.f32 %v441, %v605
    %v638 = vadd.f32 %v442, %v606
    %v639 = vadd.f32 %v443, %v607
    %v640 = vadd.f32 %v444, %v608
    %v641 = vadd.f32 %v445, %v609
    %v642 = vadd.f32 %v446, %v610
    %v643 = vadd.f32 %v447, %v611
    %v644 = vadd.f32 %v448, %v612
    %v645 = vadd.f32 %v449, %v613
    %v646 = vadd.f32 %v450, %v614
    %v647 = vadd.f32 %v451, %v615
    %v648 = vadd.f32 %v452, %v616
    %v649 = vadd.f32 %v453, %v617
    %v650 = vadd.f32 %v454, %v618
    %v651 = vadd.f32 %v455, %v619
    %v652 = vadd.f32 %v456, %v620
    %v653 = vadd.f32 %v457, %v621
    %v654 = vadd.f32 %v458, %v622
    %v655 = vadd.f32 %v459, %v623
    %v656 = vadd.f32 %v460, %v624
    %v657 = vadd.f32 %v461, %v625
    %v658 = vadd.f32 %v462, %v626
    %v659 = vadd.f32 %v463, %v627
    %v661 = vlaneseq
    %v662 = vshrl.u32 %v661, 7
    %v663 = vsub.s32 0, %v662
    %v664 = vrot.slane %v54, %v663
    %v666 = vadd.f32 %v628, %v664
    %v667 = vadd.f32 %v629, %v664
    %v668 = vadd.f32 %v630, %v664
    %v669 = vadd.f32 %v631, %v664
    %v670 = vadd.f32 %v632, %v664
    %v671 = vadd.f32 %v633, %v664
    %v672 = vadd.f32 %v634, %v664
    %v673 = vadd.f32 %v635, %v664
    %v674 = vadd.f32 %v636, %v664
    %v675 = vadd.f32 %v637, %v664
    %v676 = vadd.f32 %v638, %v664
    %v677 = vadd.f32 %v639, %v664
    %v678 = vadd.f32 %v640, %v664
    %v679 = vadd.f32 %v641, %v664
    %v680 = vadd.f32 %v642, %v664
    %v681 = vadd.f32 %v643, %v664
    %v682 = vadd.f32 %v644, %v664
    %v683 = vadd.f32 %v645, %v664
    %v684 = vadd.f32 %v646, %v664
    %v685 = vadd.f32 %v647, %v664
    %v686 = vadd.f32 %v648, %v664
    %v687 = vadd.f32 %v649, %v664
    %v688 = vadd.f32 %v650, %v664
    %v689 = vadd.f32 %v651, %v664
    %v690 = vadd.f32 %v652, %v664
    %v691 = vadd.f32 %v653, %v664
    %v692 = vadd.f32 %v654, %v664
    %v693 = vadd.f32 %v655, %v664
    %v694 = vadd.f32 %v656, %v664
    %v695 = vadd.f32 %v657, %v664
    %v696 = vadd.f32 %v658, %v664
    %v697 = vadd.f32 %v659, %v664
    %v698 = vmax.f32 %v666, 0.0
    %v699 = vmax.f32 %v667, 0.0
    %v700 = vmax.f32 %v668, 0.0
    %v701 = vmax.f32 %v669, 0.0
    %v702 = vmax.f32 %v670, 0.0
    %v703 = vmax.f32 %v671, 0.0
    %v704 = vmax.f32 %v672, 0.0
    %v705 = vmax.f32 %v673, 0.0
    %v706 = vmax.f32 %v674, 0.0
    %v707 = vmax.f32 %v675, 0.0
    %v708 = vmax.f32 %v676, 0.0
    %v709 = vmax.f32 %v677, 0.0
    %v710 = vmax.f32 %v678, 0.0
    %v711 = vmax.f32 %v679, 0.0
    %v712 = vmax.f32 %v680, 0.0
    %v713 = vmax.f32 %v681, 0.0
    %v714 = vmax.f32 %v682, 0.0
    %v715 = vmax.f32 %v683, 0.0
    %v716 = vmax.f32 %v684, 0.0
    %v717 = vmax.f32 %v685, 0.0
    %v718 = vmax.f32 %v686, 0.0
    %v719 = vmax.f32 %v687, 0.0
    %v720 = vmax.f32 %v688, 0.0
    %v721 = vmax.f32 %v689, 0.0
    %v722 = vmax.f32 %v690, 0.0
    %v723 = vmax.f32 %v691, 0.0
    %v724 = vmax.f32 %v692, 0.0
    %v725 = vmax.f32 %v693, 0.0
    %v726 = vmax.f32 %v694, 0.0
    %v727 = vmax.f32 %v695, 0.0
    %v728 = vmax.f32 %v696, 0.0
    %v729 = vmax.f32 %v697, 0.0
    %v731 = vlaneseq
    %v732 = vshrl.u32 %v731, 7
    %v733 = vsub.s32 0, %v732
    %v734 = vrot.slane %v71, %v733
    %736 = vmatprep.subr.mxu0 0.0
    %737 = vmatpush1.msra.mxu0 %v70
    %738 = vmatprep.subr.mxu0 0.0
    %739 = vmatpush1.msra.mxu0 %v69
    %740 = vmatprep.subr.mxu0 0.0
    %741 = vmatpush1.msra.mxu0 %v68
    %742 = vmatprep.subr.mxu0 0.0
    %743 = vmatpush1.msra.mxu0 %v67
    %744 = vmatprep.subr.mxu0 0.0
    %745 = vmatpush1.msra.mxu0 %v66
    %746 = vmatprep.subr.mxu0 0.0
    %747 = vmatpush1.msra.mxu0 %v65
    %748 = vmatprep.subr.mxu0 0.0
    %749 = vmatpush1.msra.mxu0 %v64
    %750 = vmatprep.subr.mxu0 0.0
    %751 = vmatpush1.msra.mxu0 %v63
    %752 = vmatprep.subr.mxu0 0.0
    %753 = vmatpush1.msra.mxu0 %v62
    %754 = vmatprep.subr.mxu0 0.0
    %755 = vmatpush1.msra.mxu0 %v61
    %756 = vmatprep.subr.mxu0 0.0
    %757 = vmatpush1.msra.mxu0 %v60
    %758 = vmatprep.subr.mxu0 0.0
    %759 = vmatpush1.msra.mxu0 %v59
    %760 = vmatprep.subr.mxu0 0.0
    %761 = vmatpush1.msra.mxu0 %v58
    %762 = vmatprep.subr.mxu0 0.0
    %763 = vmatpush1.msra.mxu0 %v57
    %764 = vmatprep.subr.mxu0 0.0
    %765 = vmatpush1.msra.mxu0 %v56
    %766 = vmatprep.subr.mxu0 0.0
    %767 = vmatpush1.msra.mxu0 %v55
    %768 = vmatprep.subr.mxu0 0.0
    %769 = vmatpush2.msra.mxu0 0.0
    %770 = vmatprep.subr.mxu0 0.0
    %771 = vmatpush2.msra.mxu0 0.0
    %772 = vmatprep.subr.mxu0 0.0
    %773 = vmatpush2.msra.mxu0 0.0
    %774 = vmatprep.subr.mxu0 0.0
    %775 = vmatpush2.msra.mxu0 0.0
    %776 = vmatprep.subr.mxu0 0.0
    %777 = vmatpush2.msra.mxu0 0.0
    %778 = vmatprep.subr.mxu0 0.0
    %779 = vmatpush2.msra.mxu0 0.0
    %780 = vmatprep.subr.mxu0 0.0
    %781 = vmatpush2.msra.mxu0 0.0
    %782 = vmatprep.subr.mxu0 0.0
    %783 = vmatpush2.msra.mxu0 0.0
    %784 = vmatprep.subr.mxu0 0.0
    %785 = vmatpush2.msra.mxu0 0.0
    %786 = vmatprep.subr.mxu0 0.0
    %787 = vmatpush2.msra.mxu0 0.0
    %788 = vmatprep.subr.mxu0 0.0
    %789 = vmatpush2.msra.mxu0 0.0
    %790 = vmatprep.subr.mxu0 0.0
    %791 = vmatpush2.msra.mxu0 0.0
    %792 = vmatprep.subr.mxu0 0.0
    %793 = vmatpush2.msra.mxu0 0.0
    %794 = vmatprep.subr.mxu0 0.0
    %795 = vmatpush2.msra.mxu0 0.0
    %796 = vmatprep.subr.mxu0 0.0
    %797 = vmatpush2.msra.mxu0 0.0
    %798 = vmatprep.subr.mxu0 0.0
    %799 = vmatpush2.msra.mxu0 0.0
    %800 = vmatprep.mubr.f32.mxu0 0.0
    %801 = vmatmul.mubr.f32.gmra.mxu0 %v698
    %v802 = vpop.f32.mrf.mxu0
    %v803 = vadd.f32 %v734, %v802
    %v804 = vpop.f32.mrf.mxu0
    %805 = vmatprep.mubr.f32.mxu0 0.0
    %806 = vmatmul.mubr.f32.gmra.mxu0 %v699
    %v807 = vpop.f32.mrf.mxu0
    %v808 = vadd.f32 %v734, %v807
    %v809 = vpop.f32.mrf.mxu0
    %810 = vmatprep.mubr.f32.mxu0 0.0
    %811 = vmatmul.mubr.f32.gmra.mxu0 %v700
    %v812 = vpop.f32.mrf.mxu0
    %v813 = vadd.f32 %v734, %v812
    %v814 = vpop.f32.mrf.mxu0
    %815 = vmatprep.mubr.f32.mxu0 0.0
    %816 = vmatmul.mubr.f32.gmra.mxu0 %v701
    %v817 = vpop.f32.mrf.mxu0
    %v818 = vadd.f32 %v734, %v817
    %v819 = vpop.f32.mrf.mxu0
    %820 = vmatprep.mubr.f32.mxu0 0.0
    %821 = vmatmul.mubr.f32.gmra.mxu0 %v702
    %v822 = vpop.f32.mrf.mxu0
    %v823 = vadd.f32 %v734, %v822
    %v824 = vpop.f32.mrf.mxu0
    %825 = vmatprep.mubr.f32.mxu0 0.0
    %826 = vmatmul.mubr.f32.gmra.mxu0 %v703
    %v827 = vpop.f32.mrf.mxu0
    %v828 = vadd.f32 %v734, %v827
    %v829 = vpop.f32.mrf.mxu0
    %830 = vmatprep.mubr.f32.mxu0 0.0
    %831 = vmatmul.mubr.f32.gmra.mxu0 %v704
    %v832 = vpop.f32.mrf.mxu0
    %v833 = vadd.f32 %v734, %v832
    %v834 = vpop.f32.mrf.mxu0
    %835 = vmatprep.mubr.f32.mxu0 0.0
    %836 = vmatmul.mubr.f32.gmra.mxu0 %v705
    %v837 = vpop.f32.mrf.mxu0
    %v838 = vadd.f32 %v734, %v837
    %v839 = vpop.f32.mrf.mxu0
    %840 = vmatprep.mubr.f32.mxu0 0.0
    %841 = vmatmul.mubr.f32.gmra.mxu0 %v706
    %v842 = vpop.f32.mrf.mxu0
    %v843 = vadd.f32 %v734, %v842
    %v844 = vpop.f32.mrf.mxu0
    %845 = vmatprep.mubr.f32.mxu0 0.0
    %846 = vmatmul.mubr.f32.gmra.mxu0 %v707
    %v847 = vpop.f32.mrf.mxu0
    %v848 = vadd.f32 %v734, %v847
    %v849 = vpop.f32.mrf.mxu0
    %850 = vmatprep.mubr.f32.mxu0 0.0
    %851 = vmatmul.mubr.f32.gmra.mxu0 %v708
    %v852 = vpop.f32.mrf.mxu0
    %v853 = vadd.f32 %v734, %v852
    %v854 = vpop.f32.mrf.mxu0
    %855 = vmatprep.mubr.f32.mxu0 0.0
    %856 = vmatmul.mubr.f32.gmra.mxu0 %v709
    %v857 = vpop.f32.mrf.mxu0
    %v858 = vadd.f32 %v734, %v857
    %v859 = vpop.f32.mrf.mxu0
    %860 = vmatprep.mubr.f32.mxu0 0.0
    %861 = vmatmul.mubr.f32.gmra.mxu0 %v710
    %v862 = vpop.f32.mrf.mxu0
    %v863 = vadd.f32 %v734, %v862
    %v864 = vpop.f32.mrf.mxu0
    %865 = vmatprep.mubr.f32.mxu0 0.0
    %866 = vmatmul.mubr.f32.gmra.mxu0 %v711
    %v867 = vpop.f32.mrf.mxu0
    %v868 = vadd.f32 %v734, %v867
    %v869 = vpop.f32.mrf.mxu0
    %870 = vmatprep.mubr.f32.mxu0 0.0
    %871 = vmatmul.mubr.f32.gmra.mxu0 %v712
    %v872 = vpop.f32.mrf.mxu0
    %v873 = vadd.f32 %v734, %v872
    %v874 = vpop.f32.mrf.mxu0
    %875 = vmatprep.mubr.f32.mxu0 0.0
    %876 = vmatmul.mubr.f32.gmra.mxu0 %v713
    %v877 = vpop.f32.mrf.mxu0
    %v878 = vadd.f32 %v734, %v877
    %v879 = vpop.f32.mrf.mxu0
    %880 = vmatprep.mubr.f32.mxu0 0.0
    %881 = vmatmul.mubr.f32.gmra.mxu0 %v714
    %v882 = vpop.f32.mrf.mxu0
    %v883 = vadd.f32 %v734, %v882
    %v884 = vpop.f32.mrf.mxu0
    %885 = vmatprep.mubr.f32.mxu0 0.0
    %886 = vmatmul.mubr.f32.gmra.mxu0 %v715
    %v887 = vpop.f32.mrf.mxu0
    %v888 = vadd.f32 %v734, %v887
    %v889 = vpop.f32.mrf.mxu0
    %890 = vmatprep.mubr.f32.mxu0 0.0
    %891 = vmatmul.mubr.f32.gmra.mxu0 %v716
    %v892 = vpop.f32.mrf.mxu0
    %v893 = vadd.f32 %v734, %v892
    %v894 = vpop.f32.mrf.mxu0
    %895 = vmatprep.mubr.f32.mxu0 0.0
    %896 = vmatmul.mubr.f32.gmra.mxu0 %v717
    %v897 = vpop.f32.mrf.mxu0
    %v898 = vadd.f32 %v734, %v897
    %v899 = vpop.f32.mrf.mxu0
    %900 = vmatprep.mubr.f32.mxu0 0.0
    %901 = vmatmul.mubr.f32.gmra.mxu0 %v718
    %v902 = vpop.f32.mrf.mxu0
    %v903 = vadd.f32 %v734, %v902
    %v904 = vpop.f32.mrf.mxu0
    %905 = vmatprep.mubr.f32.mxu0 0.0
    %906 = vmatmul.mubr.f32.gmra.mxu0 %v719
    %v907 = vpop.f32.mrf.mxu0
    %v908 = vadd.f32 %v734, %v907
    %v909 = vpop.f32.mrf.mxu0
    %910 = vmatprep.mubr.f32.mxu0 0.0
    %911 = vmatmul.mubr.f32.gmra.mxu0 %v720
    %v912 = vpop.f32.mrf.mxu0
    %v913 = vadd.f32 %v734, %v912
    %v914 = vpop.f32.mrf.mxu0
    %915 = vmatprep.mubr.f32.mxu0 0.0
    %916 = vmatmul.mubr.f32.gmra.mxu0 %v721
    %v917 = vpop.f32.mrf.mxu0
    %v918 = vadd.f32 %v734, %v917
    %v919 = vpop.f32.mrf.mxu0
    %920 = vmatprep.mubr.f32.mxu0 0.0
    %921 = vmatmul.mubr.f32.gmra.mxu0 %v722
    %v922 = vpop.f32.mrf.mxu0
    %v923 = vadd.f32 %v734, %v922
    %v924 = vpop.f32.mrf.mxu0
    %925 = vmatprep.mubr.f32.mxu0 0.0
    %926 = vmatmul.mubr.f32.gmra.mxu0 %v723
    %v927 = vpop.f32.mrf.mxu0
    %v928 = vadd.f32 %v734, %v927
    %v929 = vpop.f32.mrf.mxu0
    %930 = vmatprep.mubr.f32.mxu0 0.0
    %931 = vmatmul.mubr.f32.gmra.mxu0 %v724
    %v932 = vpop.f32.mrf.mxu0
    %v933 = vadd.f32 %v734, %v932
    %v934 = vpop.f32.mrf.mxu0
    %935 = vmatprep.mubr.f32.mxu0 0.0
    %936 = vmatmul.mubr.f32.gmra.mxu0 %v725
    %v937 = vpop.f32.mrf.mxu0
    %v938 = vadd.f32 %v734, %v937
    %v939 = vpop.f32.mrf.mxu0
    %940 = vmatprep.mubr.f32.mxu0 0.0
    %941 = vmatmul.mubr.f32.gmra.mxu0 %v726
    %v942 = vpop.f32.mrf.mxu0
    %v943 = vadd.f32 %v734, %v942
    %v944 = vpop.f32.mrf.mxu0
    %945 = vmatprep.mubr.f32.mxu0 0.0
    %946 = vmatmul.mubr.f32.gmra.mxu0 %v727
    %v947 = vpop.f32.mrf.mxu0
    %v948 = vadd.f32 %v734, %v947
    %v949 = vpop.f32.mrf.mxu0
    %950 = vmatprep.mubr.f32.mxu0 0.0
    %951 = vmatmul.mubr.f32.gmra.mxu0 %v728
    %v952 = vpop.f32.mrf.mxu0
    %v953 = vadd.f32 %v734, %v952
    %v954 = vpop.f32.mrf.mxu0
    %955 = vmatprep.mubr.f32.mxu0 0.0
    %956 = vmatmul.mubr.f32.gmra.mxu0 %v729
    %v957 = vpop.f32.mrf.mxu0
    %v958 = vadd.f32 %v734, %v957
    %v959 = vpop.f32.mrf.mxu0
    %960 = vdwg.mxu0
    %961 = vst [vmem:[#allocation2] sm:$0xff] %v803
    %962 = vst [vmem:[#allocation2 + $0x8] sm:$0xff] %v808
    %963 = vst [vmem:[#allocation2 + $0x10] sm:$0xff] %v813
    %964 = vst [vmem:[#allocation2 + $0x18] sm:$0xff] %v818
    %965 = vst [vmem:[#allocation2 + $0x20] sm:$0xff] %v823
    %966 = vst [vmem:[#allocation2 + $0x28] sm:$0xff] %v828
    %967 = vst [vmem:[#allocation2 + $0x30] sm:$0xff] %v833
    %968 = vst [vmem:[#allocation2 + $0x38] sm:$0xff] %v838
    %969 = vst [vmem:[#allocation2 + $0x40] sm:$0xff] %v843
    %970 = vst [vmem:[#allocation2 + $0x48] sm:$0xff] %v848
    %971 = vst [vmem:[#allocation2 + $0x50] sm:$0xff] %v853
    %972 = vst [vmem:[#allocation2 + $0x58] sm:$0xff] %v858
    %973 = vst [vmem:[#allocation2 + $0x60] sm:$0xff] %v863
    %974 = vst [vmem:[#allocation2 + $0x68] sm:$0xff] %v868
    %975 = vst [vmem:[#allocation2 + $0x70] sm:$0xff] %v873
    %976 = vst [vmem:[#allocation2 + $0x78] sm:$0xff] %v878
    %977 = vst [vmem:[#allocation2 + $0x80] sm:$0xff] %v883
    %978 = vst [vmem:[#allocation2 + $0x88] sm:$0xff] %v888
    %979 = vst [vmem:[#allocation2 + $0x90] sm:$0xff] %v893
    %980 = vst [vmem:[#allocation2 + $0x98] sm:$0xff] %v898
    %981 = vst [vmem:[#allocation2 + $0xa0] sm:$0xff] %v903
    %982 = vst [vmem:[#allocation2 + $0xa8] sm:$0xff] %v908
    %983 = vst [vmem:[#allocation2 + $0xb0] sm:$0xff] %v913
    %984 = vst [vmem:[#allocation2 + $0xb8] sm:$0xff] %v918
    %985 = vst [vmem:[#allocation2 + $0xc0] sm:$0xff] %v923
    %986 = vst [vmem:[#allocation2 + $0xc8] sm:$0xff] %v928
    %987 = vst [vmem:[#allocation2 + $0xd0] sm:$0xff] %v933
    %988 = vst [vmem:[#allocation2 + $0xd8] sm:$0xff] %v938
    %989 = vst [vmem:[#allocation2 + $0xe0] sm:$0xff] %v943
    %990 = vst [vmem:[#allocation2 + $0xe8] sm:$0xff] %v948
    %991 = vst [vmem:[#allocation2 + $0xf0] sm:$0xff] %v953
    %992 = vst [vmem:[#allocation2 + $0xf8] sm:$0xff] %v958
    // Predicated region
    $region22: #{tpu_custom_call.1} parent=1 // pred_check
      _
    $region23: #{tpu_custom_call.1} parent=1 // pred_check_branch
      %994 = sbr.rel (0) target = $region25
    $region24: #{tpu_custom_call.1} parent=1 // pred_region
      %s996 = ssub.s32 4096, 4096
      %997 = vsyncadd [#allocation3], %s996
      %s998 = sshll.u32 [#allocation2], 4
      %s999 = int_to_ptr.vmem [resolvable:$true] %s998
      %1004 = dma.vmem_to_hbm [thread:$0]  %s999, 4096, %s5, [#allocation3], 128, 128, 8
    $region25: #{tpu_custom_call.1} parent=1 // pred_fallthru
      _
    // Predicated region
    $region26: #{tpu_custom_call.1} parent=1 // pred_check
      _
    $region27: #{tpu_custom_call.1} parent=1 // pred_check_branch
      %1006 = sbr.rel (0) target = $region29
    $region28: #{tpu_custom_call.1} parent=1 // pred_region
      %1007 = dma.done [#allocation3], 4096
    $region29: #{tpu_custom_call.1} parent=1 // pred_fallthru
      _
    %1008 = vsyncpa [#allocation3], 1

</llo_original>
